<compile_context>
chip_gen: v7x
topology: tpu7x:2x2x1
jax: 0.10.0
libtpu: 0.0.40
codegen_flags: <defaults>
</compile_context>

<pallas_src>
import functools

import jax
import jax.numpy as jnp
from jax.experimental import pallas as pl
from jax.experimental.pallas import tpu as pltpu

LANE = 128      # lane width: hidden/output feature dims padded to multiples of this
SUBLANE = 8     # sublane granularity for batch tiles (f32 activations/outputs)


def _round_up(n: int, m: int) -> int:
    return ((n + m - 1) // m) * m


def _mlp_kernel(x_ref, w1_ref, b1_ref, w2_ref, b2_ref, o_ref, acc_ref):
    """One (batch-tile i, hidden-tile k) step of relu(x @ w1 + b1) @ w2 + b2."""
    k = pl.program_id(1)

    @pl.when(k == 0)
    def _init():
        # Seed the f32 accumulator with the second bias (broadcast over rows).
        acc_ref[...] = jnp.broadcast_to(b2_ref[...], acc_ref.shape)

    # Cast activations to the weight compute dtype *inside* the kernel; x is
    # streamed from HBM in its original dtype (no pre-kernel round trip).
    xq = x_ref[...].astype(w1_ref.dtype)
    # fc1 partial: [tb, D_in] @ [D_in, tk] -> f32 on the MXU.
    h = jnp.dot(xq, w1_ref[...], preferred_element_type=jnp.float32)
    h = jnp.maximum(h + b1_ref[...], 0.0)          # bias + ReLU epilogue in f32
    # fc2 partial: [tb, tk] @ [tk, D_out] -> accumulate in f32.
    acc_ref[...] += jnp.dot(h.astype(w2_ref.dtype), w2_ref[...],
                            preferred_element_type=jnp.float32)

    @pl.when(k == pl.num_programs(1) - 1)
    def _finalize():
        o_ref[...] = acc_ref[...].astype(o_ref.dtype)


def prepare_params(w1, b1, w2, b2, *, block_hidden=1024,
                   compute_dtype=jnp.bfloat16):
    """One-time weight preparation (call once, NOT per forward pass).

    Casts weights to the MXU compute dtype and zero-pads the hidden/output
    dims so every kernel block is lane-dense and the hidden dim divides
    evenly into tiles of size `block_hidden` (rounded to the lane width).
    Zero padding is a mathematical no-op for the fused MLP.

    Args:
      w1: [input_size, hidden_size]  (transposed vs. PyTorch fc1.weight)
      b1: [hidden_size]
      w2: [hidden_size, output_size] (transposed vs. PyTorch fc2.weight)
      b2: [output_size]
    Returns:
      dict with padded arrays 'w1','b1','w2','b2' and static ints
      'output_size' (true output width) and 'block_hidden' (hidden tile size).
    """
    input_size, hidden_size = w1.shape
    output_size = w2.shape[1]

    d_h0 = _round_up(hidden_size, LANE)
    nk = pl.cdiv(d_h0, block_hidden)
    tk = _round_up(pl.cdiv(d_h0, nk), LANE)   # hidden tile, lane aligned
    d_h = tk * nk                             # padded hidden: exact multiple of tk
    d_out = _round_up(output_size, LANE)

    w1_p = jnp.zeros((input_size, d_h), compute_dtype).at[:, :hidden_size].set(
        w1.astype(compute_dtype))
    b1_p = jnp.zeros((1, d_h), jnp.float32).at[:, :hidden_size].set(
        b1.astype(jnp.float32)[None, :])
    w2_p = jnp.zeros((d_h, d_out), compute_dtype).at[:hidden_size, :output_size].set(
        w2.astype(compute_dtype))
    b2_p = jnp.zeros((1, d_out), jnp.float32).at[:, :output_size].set(
        b2.astype(jnp.float32)[None, :])

    return dict(w1=w1_p, b1=b1_p, w2=w2_p, b2=b2_p,
                output_size=output_size, block_hidden=tk)


@functools.partial(jax.jit,
                   static_argnames=("output_size", "block_batch", "block_hidden"))
def custom_nn_forward(x, w1_p, b1_p, w2_p, b2_p, *, output_size,
                      block_batch=256, block_hidden=1024):
    """Fused forward of CustomNN: relu(x @ w1 + b1) @ w2 + b2.

    x: [batch, input_size] (any float dtype; cast to compute dtype in-kernel).
    w*_p/b*_p: padded params from prepare_params().
    Returns [batch, output_size] float32.
    """
    batch, input_size = x.shape
    d_h = w1_p.shape[1]
    d_out = w2_p.shape[1]

    # ---- hidden (reduction) tiling: keep at most `tk` hidden units' worth of
    # w1 columns / w2 rows resident per step (fits v7x's 64 MiB/TC VMEM).
    tk = min(block_hidden, d_h)
    assert d_h % tk == 0, (
        "padded hidden dim must be a multiple of block_hidden; "
        "pass block_hidden=params['block_hidden'] from prepare_params()")
    num_k = d_h // tk

    # ---- batch tiling: balanced tiles (no ~2x over-padding), and >=2 tiles
    # whenever possible so the 'parallel' axis feeds both v7x TensorCores.
    if batch <= SUBLANE:
        tb = batch                       # single full-dim tile (legal per (8,128) rule)
    else:
        n_bt = max(pl.cdiv(batch, block_batch), 2)
        tb = _round_up(pl.cdiv(batch, n_bt), SUBLANE)
    num_bt = pl.cdiv(batch, tb)

    # ---- VMEM budget: 2x-buffered pipelined blocks + f32 accumulator scratch.
    itemsize_x = jnp.dtype(x.dtype).itemsize
    itemsize_w = jnp.dtype(w1_p.dtype).itemsize
    tb_pad = _round_up(tb, SUBLANE)
    bytes_x = tb_pad * _round_up(input_size, LANE) * itemsize_x
    bytes_w1 = _round_up(input_size, 2 * SUBLANE) * tk * itemsize_w
    bytes_b1 = SUBLANE * tk * 4
    bytes_w2 = tk * d_out * itemsize_w
    bytes_b2 = SUBLANE * d_out * 4
    bytes_out = tb_pad * d_out * 4
    bytes_acc = tb_pad * d_out * 4
    needed = 2 * (bytes_x + bytes_w1 + bytes_b1 + bytes_w2 + bytes_b2 + bytes_out) + bytes_acc
    vmem_limit = int(min(max(needed * 1.25 + (2 << 20), 32 << 20), 64 << 20))

    # ---- advisory cost estimate for XLA's scheduler around the custom call.
    flops = 2 * batch * input_size * d_h + 2 * batch * d_h * d_out
    bytes_accessed = (batch * input_size * itemsize_x
                      + num_bt * (w1_p.size + w2_p.size) * itemsize_w
                      + (b1_p.size + b2_p.size) * 4
                      + batch * d_out * 4)
    cost = pl.CostEstimate(flops=int(flops), transcendentals=0,
                           bytes_accessed=int(bytes_accessed))

    out = pl.pallas_call(
        _mlp_kernel,
        out_shape=jax.ShapeDtypeStruct((batch, d_out), jnp.float32),
        grid=(num_bt, num_k),
        in_specs=[
            # x: tiled on batch, full (unpadded) feature dim, original dtype.
            pl.BlockSpec((tb, input_size), lambda i, k: (i, 0)),
            # w1: streamed over hidden tiles, full input dim.
            pl.BlockSpec((input_size, tk), lambda i, k: (0, k)),
            pl.BlockSpec((1, tk), lambda i, k: (0, k)),        # b1 hidden tile
            # w2: hidden tile x full (lane-padded) output dim.
            pl.BlockSpec((tk, d_out), lambda i, k: (k, 0)),
            pl.BlockSpec((1, d_out), lambda i, k: (0, 0)),     # b2: resident
        ],
        out_specs=pl.BlockSpec((tb, d_out), lambda i, k: (i, 0)),
        scratch_shapes=[pltpu.VMEM((tb, d_out), jnp.float32)],
        compiler_params=pltpu.CompilerParams(
            dimension_semantics=("parallel", "arbitrary"),
            vmem_limit_bytes=vmem_limit),
        cost_estimate=cost,
    )(x, w1_p, b1_p, w2_p, b2_p)

    # No extra copy when output_size is already lane aligned.
    if d_out != output_size:
        out = out[:, :output_size]
    return out


def init_params(key, input_size, hidden_size, output_size, dtype=jnp.float32):
    """Deterministic init mimicking nn.Linear defaults (uniform +/- 1/sqrt(fan_in))."""
    k1, k2, k3, k4 = jax.random.split(key, 4)
    bound1 = 1.0 / (input_size ** 0.5)
    bound2 = 1.0 / (hidden_size ** 0.5)
    # Weights stored already transposed to [in, out] for the kernel.
    w1 = jax.random.uniform(k1, (input_size, hidden_size), dtype,
                            minval=-bound1, maxval=bound1)
    b1 = jax.random.uniform(k2, (hidden_size,), dtype,
                            minval=-bound1, maxval=bound1)
    w2 = jax.random.uniform(k3, (hidden_size, output_size), dtype,
                            minval=-bound2, maxval=bound2)
    b2 = jax.random.uniform(k4, (output_size,), dtype,
                            minval=-bound2, maxval=bound2)
    return w1, b1, w2, b2


if __name__ == "__main__":
    # Small shapes consistent with the module: batch=8, input=32, hidden=64, out=16.
    batch, input_size, hidden_size, output_size = 8, 32, 64, 16

    key = jax.random.PRNGKey(0)
    kx, kp = jax.random.split(key)
    x = jax.random.normal(kx, (batch, input_size), jnp.float32)
    w1, b1, w2, b2 = init_params(kp, input_size, hidden_size, output_size)

    # One-time weight preparation (cast + pad); NOT part of the per-call path.
    params = prepare_params(w1, b1, w2, b2)

    out = custom_nn_forward(
        x, params["w1"], params["b1"], params["w2"], params["b2"],
        output_size=params["output_size"],
        block_hidden=params["block_hidden"])
    out = jax.block_until_ready(out)

    # Reference with identical bf16-operand / f32-accumulation numerics.
    xb = x.astype(jnp.bfloat16)
    w1b = w1.astype(jnp.bfloat16)
    w2b = w2.astype(jnp.bfloat16)
    h_ref = jnp.maximum(
        jnp.dot(xb, w1b, preferred_element_type=jnp.float32) + b1[None, :], 0.0)
    ref = jnp.dot(h_ref.astype(jnp.bfloat16), w2b,
                  preferred_element_type=jnp.float32) + b2[None, :]
    # Looser check vs. full-f32 math (bf16 quantization of operands).
    ref_f32 = jnp.maximum(x @ w1 + b1[None, :], 0.0) @ w2 + b2[None, :]

    assert out.shape == (batch, output_size)
    assert jnp.allclose(out, ref, atol=2e-3, rtol=2e-3), \
        float(jnp.max(jnp.abs(out - ref)))
    assert jnp.allclose(out, ref_f32, atol=1e-1, rtol=1e-1)

    print("KERNEL_OK")
</pallas_src>

<mosaic_0001>
module attributes {stable_mosaic.version = 11 : i64} {
  func.func @_mlp_kernel(%arg0: i32, %arg1: i32, %arg2: memref<8x32xf32, #tpu.memory_space<vmem>>, %arg3: memref<32x128xbf16, #tpu.memory_space<vmem>>, %arg4: memref<1x128xf32, #tpu.memory_space<vmem>>, %arg5: memref<128x128xbf16, #tpu.memory_space<vmem>>, %arg6: memref<1x128xf32, #tpu.memory_space<vmem>>, %arg7: memref<8x128xf32, #tpu.memory_space<vmem>>, %arg8: memref<8x128xf32, #tpu.memory_space<vmem>>) attributes {dimension_semantics = [#tpu.dimension_semantics<parallel>, #tpu.dimension_semantics<arbitrary>], iteration_bounds = array<i64: 1, 1>, scalar_prefetch = 0 : i64, scratch_operands = 1 : i64, tpu.core_type = #tpu.core_type<tc>, window_params = [{transform_indices = @transform_0, window_bounds = array<i64: 8, 32>}, {transform_indices = @transform_1, window_bounds = array<i64: 32, 128>}, {transform_indices = @transform_2, window_bounds = array<i64: 1, 128>}, {transform_indices = @transform_3, window_bounds = array<i64: 128, 128>}, {pipeline_mode = #tpu.pipeline_mode<synchronous>, transform_indices = @transform_4, window_bounds = array<i64: 1, 128>}, {transform_indices = @transform_5, window_bounds = array<i64: 8, 128>}]} {
    %c0_i32 = arith.constant 0 : i32
    %0 = arith.cmpi eq, %arg1, %c0_i32 : i32
    %1 = arith.extui %0 : i1 to i32
    %c0_i32_0 = arith.constant 0 : i32
    %2 = arith.cmpi ne, %1, %c0_i32_0 : i32
    scf.if %2 {
      %c0_16 = arith.constant 0 : index
      %c0_17 = arith.constant 0 : index
      %21 = vector.load %arg6[%c0_16, %c0_17] : memref<1x128xf32, #tpu.memory_space<vmem>>, vector<1x128xf32>
      %22 = vector.shape_cast %21 : vector<1x128xf32> to vector<1x128xf32>
      %23 = vector.broadcast %22 : vector<1x128xf32> to vector<8x128xf32>
      %c0_18 = arith.constant 0 : index
      %c0_19 = arith.constant 0 : index
      %24 = vector.load %arg8[%c0_18, %c0_19] : memref<8x128xf32, #tpu.memory_space<vmem>>, vector<8x128xf32>
      tpu.vector_store %arg8[%c0_18, %c0_19], %23 {strides = array<i32>} : memref<8x128xf32, #tpu.memory_space<vmem>>, vector<8x128xf32>,
    } else {
    }
    %c0 = arith.constant 0 : index
    %c0_1 = arith.constant 0 : index
    %3 = vector.load %arg2[%c0, %c0_1] : memref<8x32xf32, #tpu.memory_space<vmem>>, vector<8x32xf32>
    %4 = arith.truncf %3 : vector<8x32xf32> to vector<8x32xbf16>
    %c0_2 = arith.constant 0 : index
    %c0_3 = arith.constant 0 : index
    %5 = vector.load %arg3[%c0_2, %c0_3] : memref<32x128xbf16, #tpu.memory_space<vmem>>, vector<32x128xbf16>
    %cst = arith.constant dense<0.000000e+00> : vector<8x128xf32>
    %6 = tpu.matmul %4, %5, %cst {dimension_numbers = #tpu.dot_dimension_numbers<[1], [0], [0], [1], [0, 0, 1, 1], [], []>} : vector<8x32xbf16>, vector<32x128xbf16>, vector<8x128xf32> -> vector<8x128xf32>
    %c0_4 = arith.constant 0 : index
    %c0_5 = arith.constant 0 : index
    %7 = vector.load %arg4[%c0_4, %c0_5] : memref<1x128xf32, #tpu.memory_space<vmem>>, vector<1x128xf32>
    %8 = vector.broadcast %7 : vector<1x128xf32> to vector<8x128xf32>
    %9 = arith.addf %6, %8 : vector<8x128xf32>
    %cst_6 = arith.constant 0.000000e+00 : f32
    %10 = vector.broadcast %cst_6 : f32 to vector<8x128xf32>
    %11 = arith.maximumf %9, %10 : vector<8x128xf32>
    %c0_7 = arith.constant 0 : index
    %c0_8 = arith.constant 0 : index
    %12 = vector.load %arg8[%c0_7, %c0_8] : memref<8x128xf32, #tpu.memory_space<vmem>>, vector<8x128xf32>
    %13 = arith.truncf %11 : vector<8x128xf32> to vector<8x128xbf16>
    %c0_9 = arith.constant 0 : index
    %c0_10 = arith.constant 0 : index
    %14 = vector.load %arg5[%c0_9, %c0_10] : memref<128x128xbf16, #tpu.memory_space<vmem>>, vector<128x128xbf16>
    %cst_11 = arith.constant dense<0.000000e+00> : vector<8x128xf32>
    %15 = tpu.matmul %13, %14, %cst_11 {dimension_numbers = #tpu.dot_dimension_numbers<[1], [0], [0], [1], [0, 0, 1, 1], [], []>} : vector<8x128xbf16>, vector<128x128xbf16>, vector<8x128xf32> -> vector<8x128xf32>
    %16 = arith.addf %12, %15 : vector<8x128xf32>
    %c0_12 = arith.constant 0 : index
    %c0_13 = arith.constant 0 : index
    %17 = vector.load %arg8[%c0_12, %c0_13] : memref<8x128xf32, #tpu.memory_space<vmem>>, vector<8x128xf32>
    tpu.vector_store %arg8[%c0_12, %c0_13], %16 {strides = array<i32>} : memref<8x128xf32, #tpu.memory_space<vmem>>, vector<8x128xf32>,
    %c0_i32_14 = arith.constant 0 : i32
    %18 = arith.cmpi eq, %arg1, %c0_i32_14 : i32
    %19 = arith.extui %18 : i1 to i32
    %c0_i32_15 = arith.constant 0 : i32
    %20 = arith.cmpi ne, %19, %c0_i32_15 : i32
    scf.if %20 {
      %c0_16 = arith.constant 0 : index
      %c0_17 = arith.constant 0 : index
      %21 = vector.load %arg8[%c0_16, %c0_17] : memref<8x128xf32, #tpu.memory_space<vmem>>, vector<8x128xf32>
      %c0_18 = arith.constant 0 : index
      %c0_19 = arith.constant 0 : index
      %22 = vector.load %arg7[%c0_18, %c0_19] : memref<8x128xf32, #tpu.memory_space<vmem>>, vector<8x128xf32>
      tpu.vector_store %arg7[%c0_18, %c0_19], %21 {strides = array<i32>} : memref<8x128xf32, #tpu.memory_space<vmem>>, vector<8x128xf32>,
    } else {
    }
    return
  }
  func.func @transform_0(%arg0: i32, %arg1: i32) -> (i32, i32) {
    %c0_i32 = arith.constant 0 : i32
    %c0_i32_0 = arith.constant 0 : i32
    return %arg0, %c0_i32 : i32, i32
  }
  func.func @transform_1(%arg0: i32, %arg1: i32) -> (i32, i32) {
    %c0_i32 = arith.constant 0 : i32
    %c0_i32_0 = arith.constant 0 : i32
    return %c0_i32, %arg1 : i32, i32
  }
  func.func @transform_2(%arg0: i32, %arg1: i32) -> (i32, i32) {
    %c0_i32 = arith.constant 0 : i32
    %c0_i32_0 = arith.constant 0 : i32
    return %c0_i32, %arg1 : i32, i32
  }
  func.func @transform_3(%arg0: i32, %arg1: i32) -> (i32, i32) {
    %c0_i32 = arith.constant 0 : i32
    %c0_i32_0 = arith.constant 0 : i32
    return %arg1, %c0_i32 : i32, i32
  }
  func.func @transform_4(%arg0: i32, %arg1: i32) -> (i32, i32) {
    %c0_i32 = arith.constant 0 : i32
    %c0_i32_0 = arith.constant 0 : i32
    %c0_i32_1 = arith.constant 0 : i32
    return %c0_i32, %c0_i32_0 : i32, i32
  }
  func.func @transform_5(%arg0: i32, %arg1: i32) -> (i32, i32) {
    %c0_i32 = arith.constant 0 : i32
    %c0_i32_0 = arith.constant 0 : i32
    return %arg0, %c0_i32 : i32, i32
  }
}

</mosaic_0001>

<llo_original>
// kernel: custom_nn_forward.1
$region0: #{custom_nn_forward.1}
  #allocation0 [shape = 'u32[]', space=smem, size = 0x4, offset = 0x4, fixed_abs, tag = 'smem constant byte address 0x4 - core index']
  #allocation1 [shape = 'u32[144,128]{1,0:T(1,128)}', space=vmem, size = 0x12000, scoped, tag = 'internal scratch']
  #allocation2 [shape = 'f32[8,128]{1,0:T(8,128)}', space=vmem, size = 0x1000, scoped, tag = 'scratch operand']
  %s0 = inlined_call_operand.hbm [shape: f32[8,32], index: 0, kind: input, shape index: {}]
  %s1 = inlined_call_operand.hbm [shape: bf16[32,128], index: 1, kind: input, shape index: {}]
  %s2 = inlined_call_operand.vmem [shape: f32[1,128], index: 2, kind: input, shape index: {}]
  %s3 = inlined_call_operand.hbm [shape: bf16[128,128], index: 3, kind: input, shape index: {}]
  %s4 = inlined_call_operand.vmem [shape: f32[1,128], index: 4, kind: input, shape index: {}]
  %s5 = inlined_call_operand.hbm [shape: f32[8,128], index: 5, kind: output, shape index: {}]
  %s6 = sld [smem:[#allocation0]]
  $region50: #{custom_nn_forward.1} parent=0
    _
  %s8 = ssub.s32 1, %s6
  %s9 = scalar_select 0, %s8, %s6
  $region1: #{custom_nn_forward.1} parent=0
    #allocation3 [shape = 'u8[4096]{0}', space=vmem, size = 0x1000, scoped, tag = 'input window, operand 0, single buffered']
    #allocation4 [shape = 's32[1]{0}', space=sflag, size = 0x4, scoped, tag = 'scoped memory for custom_nn_forward.1']
    #allocation5 [shape = 's32[1]{0}', space=sflag, size = 0x4, scoped, tag = 'scoped memory for custom_nn_forward.1']
    #allocation6 [shape = 'u8[8192]{0}', space=vmem, size = 0x2000, scoped, tag = 'input window, operand 1, single buffered']
    #allocation7 [shape = 's32[1]{0}', space=sflag, size = 0x4, scoped, tag = 'scoped memory for custom_nn_forward.1']
    #allocation8 [shape = 'u8[32768]{0}', space=vmem, size = 0x8000, scoped, tag = 'input window, operand 3, single buffered']
    #allocation9 [shape = 'u8[4096]{0}', space=vmem, size = 0x1000, scoped, tag = 'output window, operand 0, single buffered']
    %10 = vsyncpa [#allocation4], 0
    %11 = vsyncpa [#allocation7], 0
    %12 = vsyncpa [#allocation5], 0
    // Predicated region
    $region2: #{custom_nn_forward.1} parent=1 // pred_check
      _
    $region3: #{custom_nn_forward.1} parent=1 // pred_check_branch
      %14 = sbr.rel (0) target = $region5
    $region4: #{custom_nn_forward.1} parent=1 // pred_region
      %s16 = ssub.s32 128, 128
      %17 = vsyncadd [#allocation4], %s16
      %s19 = sshll.u32 [#allocation3], 4
      %s20 = int_to_ptr.vmem [resolvable:$true] %s19
      %22 = dma.hbm_to_vmem [thread:$0]  %s0, 128, %s20, [#allocation4]
    $region5: #{custom_nn_forward.1} parent=1 // pred_fallthru
      _
    // Predicated region
    $region6: #{custom_nn_forward.1} parent=1 // pred_check
      _
    $region7: #{custom_nn_forward.1} parent=1 // pred_check_branch
      %24 = sbr.rel (0) target = $region9
    $region8: #{custom_nn_forward.1} parent=1 // pred_region
      %s26 = ssub.s32 256, 256
      %27 = vsyncadd [#allocation7], %s26
      %s28 = sshll.u32 [#allocation6], 4
      %s29 = int_to_ptr.vmem [resolvable:$true] %s28
      %34 = dma.hbm_to_vmem [thread:$0]  %s1, 256, %s29, [#allocation7], 64, 64, 4
    $region9: #{custom_nn_forward.1} parent=1 // pred_fallthru
      _
    // Predicated region
    $region10: #{custom_nn_forward.1} parent=1 // pred_check
      _
    $region11: #{custom_nn_forward.1} parent=1 // pred_check_branch
      %36 = sbr.rel (0) target = $region13
    $region12: #{custom_nn_forward.1} parent=1 // pred_region
      _
    $region13: #{custom_nn_forward.1} parent=1 // pred_fallthru
      _
    // Predicated region
    $region14: #{custom_nn_forward.1} parent=1 // pred_check
      _
    $region15: #{custom_nn_forward.1} parent=1 // pred_check_branch
      %38 = sbr.rel (0) target = $region17
    $region16: #{custom_nn_forward.1} parent=1 // pred_region
      %s40 = ssub.s32 1024, 1024
      %41 = vsyncadd [#allocation7], %s40
      %s42 = sshll.u32 [#allocation8], 4
      %s43 = int_to_ptr.vmem [resolvable:$true] %s42
      %48 = dma.hbm_to_vmem [thread:$0]  %s3, 1024, %s43, [#allocation7], 64, 64, 4
    $region17: #{custom_nn_forward.1} parent=1 // pred_fallthru
      _
    // Predicated region
    $region18: #{custom_nn_forward.1} parent=1 // pred_check
      _
    $region19: #{custom_nn_forward.1} parent=1 // pred_check_branch
      %50 = sbr.rel (0) target = $region21
    $region20: #{custom_nn_forward.1} parent=1 // pred_region
      _
    $region21: #{custom_nn_forward.1} parent=1 // pred_fallthru
      _
    // Predicated region
    $region22: #{custom_nn_forward.1} parent=1 // pred_check
      _
    $region23: #{custom_nn_forward.1} parent=1 // pred_check_branch
      %52 = sbr.rel (0) target = $region25
    $region24: #{custom_nn_forward.1} parent=1 // pred_region
      %53 = dma.done [#allocation4], 128
    $region25: #{custom_nn_forward.1} parent=1 // pred_fallthru
      _
    // Predicated region
    $region26: #{custom_nn_forward.1} parent=1 // pred_check
      _
    $region27: #{custom_nn_forward.1} parent=1 // pred_check_branch
      %55 = sbr.rel (0) target = $region29
    $region28: #{custom_nn_forward.1} parent=1 // pred_region
      %56 = dma.done [#allocation7], 256
    $region29: #{custom_nn_forward.1} parent=1 // pred_fallthru
      _
    // Predicated region
    $region30: #{custom_nn_forward.1} parent=1 // pred_check
      _
    $region31: #{custom_nn_forward.1} parent=1 // pred_check_branch
      %58 = sbr.rel (0) target = $region33
    $region32: #{custom_nn_forward.1} parent=1 // pred_region
      %59 = dma.done [#allocation7], 1024
    $region33: #{custom_nn_forward.1} parent=1 // pred_fallthru
      _
    %p61 = scmp.eq.s32.totalorder 0, 0
    // Predicated region
    $region34: #{custom_nn_forward.1} parent=1 // pred_check
      %p62 = pneg %p61
    $region35: #{custom_nn_forward.1} parent=1 // pred_check_branch
      %64 = sbr.rel (%p62) target = $region37
    $region36: #{custom_nn_forward.1} parent=1 // pred_region
      %v65 = vld [vmem:[%s4] sm:$0x1]
      %v67 = vlaneseq
      %v68 = vshrl.u32 %v67, 7
      %v69 = vsub.s32 0, %v68
      %v70 = vrot.slane %v65, %v69
      %72 = vst [vmem:[#allocation2] sm:$0xff] %v70
    $region37: #{custom_nn_forward.1} parent=1 // pred_fallthru
      _
    %v73 = vld [vmem:[#allocation3] sm:$0xff]
    %v74 = vpack.c.bf16 %v73, %v73
    %v75 = vld [vmem:[#allocation6] sm:$0xf]
    %v76 = vld [vmem:[#allocation6 + $0x4] sm:$0xf]
    %v77 = vld [vmem:[#allocation6 + $0x8] sm:$0xf]
    %v78 = vld [vmem:[#allocation6 + $0xc] sm:$0xf]
    %v79 = vld [vmem:[%s2] sm:$0x1]
    %v81 = vlaneseq
    %v82 = vshrl.u32 %v81, 7
    %v83 = vsub.s32 0, %v82
    %v84 = vrot.slane %v79, %v83
    %v90 = vunpack.c.l.b16 %v75
    %v91 = vunpack.c.l.b16 %v76
    %v92 = vunpack.c.l.b16 %v77
    %v93 = vunpack.c.l.b16 %v78
    %v94 = vpack.c.b16 %v91, %v90
    %v95 = vpack.c.b16 %v93, %v92
    %vm98 = vcmask 261120
    %v100 = vsel %vm98, %v74, 0
    %102 = vmatprep.subr.bf16.mxu0 0
    %103 = vmatpush1.bf16.msra.mxu0 %v94
    %104 = vmatprep.subr.bf16.mxu0 0
    %105 = vmatpush1.bf16.msra.mxu0 %v95
    %106 = vmatprep.subr.bf16.mxu0 0
    %107 = vmatpush1.bf16.msra.mxu0 0
    %108 = vmatprep.subr.bf16.mxu0 0
    %109 = vmatpush1.bf16.msra.mxu0 0
    %110 = vmatprep.subr.bf16.mxu0 0
    %111 = vmatpush1.bf16.msra.mxu0 0
    %112 = vmatprep.subr.bf16.mxu0 0
    %113 = vmatpush1.bf16.msra.mxu0 0
    %114 = vmatprep.subr.bf16.mxu0 0
    %115 = vmatpush1.bf16.msra.mxu0 0
    %116 = vmatprep.subr.bf16.mxu0 0
    %117 = vmatpush1.bf16.msra.mxu0 0
    %118 = vmatprep.subr.bf16.mxu0 0
    %119 = vmatpush1.bf16.msra.mxu0 0
    %120 = vmatprep.subr.bf16.mxu0 0
    %121 = vmatpush1.bf16.msra.mxu0 0
    %122 = vmatprep.subr.bf16.mxu0 0
    %123 = vmatpush1.bf16.msra.mxu0 0
    %124 = vmatprep.subr.bf16.mxu0 0
    %125 = vmatpush1.bf16.msra.mxu0 0
    %126 = vmatprep.subr.bf16.mxu0 0
    %127 = vmatpush1.bf16.msra.mxu0 0
    %128 = vmatprep.subr.bf16.mxu0 0
    %129 = vmatpush1.bf16.msra.mxu0 0
    %130 = vmatprep.subr.bf16.mxu0 0
    %131 = vmatpush1.bf16.msra.mxu0 0
    %132 = vmatprep.subr.bf16.mxu0 0
    %133 = vmatpush1.bf16.msra.mxu0 0
    %134 = vmatprep.mubr.bf16.mxu0 0
    %135 = vmatmul.mubr.bf16.gmra.mrb[0].mxu0 %v100
    %v136 = vpop.f32.mrb[0].mxu0
    %v137 = vadd.f32 %v84, %v136
    %v138 = vpop.f32.mrb[0].mxu0
    %v139 = vpop.f32.mrb[0].mxu0
    %v140 = vpop.f32.mrb[0].mxu0
    %141 = vdwg.mxu0
    %v142 = vmax.f32 %v137, 0.0
    %v143 = vld [vmem:[#allocation2] sm:$0xff]
    %v144 = vpack.c.bf16 %v142, %v142
    %v145 = vld [vmem:[#allocation8] sm:$0xf]
    %v146 = vld [vmem:[#allocation8 + $0x4] sm:$0xf]
    %v147 = vld [vmem:[#allocation8 + $0x8] sm:$0xf]
    %v148 = vld [vmem:[#allocation8 + $0xc] sm:$0xf]
    %v149 = vld [vmem:[#allocation8 + $0x10] sm:$0xf]
    %v150 = vld [vmem:[#allocation8 + $0x14] sm:$0xf]
    %v151 = vld [vmem:[#allocation8 + $0x18] sm:$0xf]
    %v152 = vld [vmem:[#allocation8 + $0x1c] sm:$0xf]
    %v153 = vld [vmem:[#allocation8 + $0x20] sm:$0xf]
    %v154 = vld [vmem:[#allocation8 + $0x24] sm:$0xf]
    %v155 = vld [vmem:[#allocation8 + $0x28] sm:$0xf]
    %v156 = vld [vmem:[#allocation8 + $0x2c] sm:$0xf]
    %v157 = vld [vmem:[#allocation8 + $0x30] sm:$0xf]
    %v158 = vld [vmem:[#allocation8 + $0x34] sm:$0xf]
    %v159 = vld [vmem:[#allocation8 + $0x38] sm:$0xf]
    %v160 = vld [vmem:[#allocation8 + $0x3c] sm:$0xf]
    %v177 = vunpack.c.l.b16 %v145
    %v178 = vunpack.c.l.b16 %v146
    %v179 = vunpack.c.l.b16 %v147
    %v180 = vunpack.c.l.b16 %v148
    %v181 = vunpack.c.l.b16 %v149
    %v182 = vunpack.c.l.b16 %v150
    %v183 = vunpack.c.l.b16 %v151
    %v184 = vunpack.c.l.b16 %v152
    %v185 = vunpack.c.l.b16 %v153
    %v186 = vunpack.c.l.b16 %v154
    %v187 = vunpack.c.l.b16 %v155
    %v188 = vunpack.c.l.b16 %v156
    %v189 = vunpack.c.l.b16 %v157
    %v190 = vunpack.c.l.b16 %v158
    %v191 = vunpack.c.l.b16 %v159
    %v192 = vunpack.c.l.b16 %v160
    %v193 = vpack.c.b16 %v178, %v177
    %v194 = vpack.c.b16 %v180, %v179
    %v195 = vpack.c.b16 %v182, %v181
    %v196 = vpack.c.b16 %v184, %v183
    %v197 = vpack.c.b16 %v186, %v185
    %v198 = vpack.c.b16 %v188, %v187
    %v199 = vpack.c.b16 %v190, %v189
    %v200 = vpack.c.b16 %v192, %v191
    %209 = vmatprep.subr.bf16.mxu0 0
    %210 = vmatpush1.bf16.msra.mxu0 %v193
    %211 = vmatprep.subr.bf16.mxu0 0
    %212 = vmatpush1.bf16.msra.mxu0 %v194
    %213 = vmatprep.subr.bf16.mxu0 0
    %214 = vmatpush1.bf16.msra.mxu0 %v195
    %215 = vmatprep.subr.bf16.mxu0 0
    %216 = vmatpush1.bf16.msra.mxu0 %v196
    %217 = vmatprep.subr.bf16.mxu0 0
    %218 = vmatpush1.bf16.msra.mxu0 %v197
    %219 = vmatprep.subr.bf16.mxu0 0
    %220 = vmatpush1.bf16.msra.mxu0 %v198
    %221 = vmatprep.subr.bf16.mxu0 0
    %222 = vmatpush1.bf16.msra.mxu0 %v199
    %223 = vmatprep.subr.bf16.mxu0 0
    %224 = vmatpush1.bf16.msra.mxu0 %v200
    %225 = vmatprep.subr.bf16.mxu0 0
    %226 = vmatpush1.bf16.msra.mxu0 0
    %227 = vmatprep.subr.bf16.mxu0 0
    %228 = vmatpush1.bf16.msra.mxu0 0
    %229 = vmatprep.subr.bf16.mxu0 0
    %230 = vmatpush1.bf16.msra.mxu0 0
    %231 = vmatprep.subr.bf16.mxu0 0
    %232 = vmatpush1.bf16.msra.mxu0 0
    %233 = vmatprep.subr.bf16.mxu0 0
    %234 = vmatpush1.bf16.msra.mxu0 0
    %235 = vmatprep.subr.bf16.mxu0 0
    %236 = vmatpush1.bf16.msra.mxu0 0
    %237 = vmatprep.subr.bf16.mxu0 0
    %238 = vmatpush1.bf16.msra.mxu0 0
    %239 = vmatprep.subr.bf16.mxu0 0
    %240 = vmatpush1.bf16.msra.mxu0 0
    %241 = vmatprep.mubr.bf16.mxu0 0
    %242 = vmatmul.mubr.bf16.gmra.mrb[0].mxu0 %v144
    %v243 = vpop.f32.mrb[0].mxu0
    %v244 = vadd.f32 0.0, %v243
    %v245 = vpop.f32.mrb[0].mxu0
    %v246 = vpop.f32.mrb[0].mxu0
    %v247 = vpop.f32.mrb[0].mxu0
    %248 = vdwg.mxu0
    %v249 = vadd.f32 %v143, %v244
    %250 = vst [vmem:[#allocation2] sm:$0xff] %v249
    // Predicated region
    $region38: #{custom_nn_forward.1} parent=1 // pred_check
      %p251 = pneg %p61
    $region39: #{custom_nn_forward.1} parent=1 // pred_check_branch
      %253 = sbr.rel (%p251) target = $region41
    $region40: #{custom_nn_forward.1} parent=1 // pred_region
      %v254 = vld [vmem:[#allocation2] sm:$0xff]
      %255 = vst [vmem:[#allocation9] sm:$0xff] %v254
    $region41: #{custom_nn_forward.1} parent=1 // pred_fallthru
      _
    // Predicated region
    $region42: #{custom_nn_forward.1} parent=1 // pred_check
      _
    $region43: #{custom_nn_forward.1} parent=1 // pred_check_branch
      %257 = sbr.rel (0) target = $region45
    $region44: #{custom_nn_forward.1} parent=1 // pred_region
      %s259 = ssub.s32 128, 128
      %260 = vsyncadd [#allocation5], %s259
      %s262 = sshll.u32 [#allocation9], 4
      %s263 = int_to_ptr.vmem [resolvable:$true] %s262
      %265 = dma.vmem_to_hbm [thread:$0]  %s263, 128, %s5, [#allocation5]
    $region45: #{custom_nn_forward.1} parent=1 // pred_fallthru
      _
    // Predicated region
    $region46: #{custom_nn_forward.1} parent=1 // pred_check
      _
    $region47: #{custom_nn_forward.1} parent=1 // pred_check_branch
      %267 = sbr.rel (0) target = $region49
    $region48: #{custom_nn_forward.1} parent=1 // pred_region
      %268 = dma.done [#allocation5], 128
    $region49: #{custom_nn_forward.1} parent=1 // pred_fallthru
      _
    %269 = vsyncpa [#allocation4], 1
    %270 = vsyncpa [#allocation7], 1
    %271 = vsyncpa [#allocation5], 1

</llo_original>
